<compile_context>
chip_gen: v7x
topology: tpu7x:2x2x1
jax: 0.10.0
libtpu: 0.0.40
codegen_flags: <defaults>
</compile_context>

<pallas_src>
import math
import jax
import jax.numpy as jnp
from jax.experimental import pallas as pl
from jax.experimental.pallas import tpu as pltpu


def _round_up(x, m):
    return ((x + m - 1) // m) * m


def _generator_kernel_masked(x_ref, w_ref, b_ref, m_ref, o_ref):
    # logits = x @ W + b   (bf16 inputs, f32 MXU accumulation)
    logits = jnp.dot(x_ref[...], w_ref[...], preferred_element_type=jnp.float32)
    logits = logits + b_ref[...]
    # masked_fill(visited_mask, -1e9)  -- mask passed as int8 (1 = visited)
    logits = jnp.where(m_ref[...] != 0, jnp.float32(-1000000000.0), logits)
    # numerically stable log_softmax along the last (lane) dim
    row_max = jnp.max(logits, axis=-1, keepdims=True)
    shifted = logits - row_max
    lse = jnp.log(jnp.sum(jnp.exp(shifted), axis=-1, keepdims=True))
    o_ref[...] = shifted - lse


def _generator_kernel_nomask(x_ref, w_ref, b_ref, o_ref):
    logits = jnp.dot(x_ref[...], w_ref[...], preferred_element_type=jnp.float32)
    logits = logits + b_ref[...]
    row_max = jnp.max(logits, axis=-1, keepdims=True)
    shifted = logits - row_max
    lse = jnp.log(jnp.sum(jnp.exp(shifted), axis=-1, keepdims=True))
    o_ref[...] = shifted - lse


def generator_forward(x, weight_t, bias, visited_mask=None, *, row_tile=256):
    """x: [B, S, d_model]; weight_t: [d_model, sz]; bias: [sz];
    visited_mask: optional [B, S, sz] bool. Returns log-probs [B, S, sz] f32."""
    B, S, d_model = x.shape
    sz = weight_t.shape[1]
    N = B * S

    # Lane-dense vocab padding and row-tile selection.
    sz_p = _round_up(sz, 128)
    row_tile = max(8, min(row_tile, _round_up(N, 8)))
    N_p = _round_up(N, row_tile)

    # bf16 matmul operands (f32 accumulation happens inside the kernel).
    x2 = jnp.zeros((N_p, d_model), jnp.bfloat16).at[:N].set(
        x.reshape(N, d_model).astype(jnp.bfloat16))
    w_p = jnp.zeros((d_model, sz_p), jnp.bfloat16).at[:, :sz].set(
        weight_t.astype(jnp.bfloat16))
    # Padded vocab columns get a huge negative bias so they never contribute
    # to the logsumexp (they are sliced off below anyway).
    b_p = jnp.full((1, sz_p), -1e30, jnp.float32).at[0, :sz].set(
        bias.astype(jnp.float32))

    grid = (N_p // row_tile,)

    # Explicit VMEM budget: double-buffered tiles + resident W, 16 MiB headroom,
    # capped at 64 MiB so it is still valid on v7x.
    est_vmem = 2 * (
        row_tile * d_model * 2        # x tile (bf16)
        + d_model * sz_p * 2          # W (bf16, resident)
        + sz_p * 4                    # bias (f32)
        + row_tile * sz_p * 1         # mask tile (int8)
        + row_tile * sz_p * 4         # output tile (f32)
    )
    cp = pltpu.CompilerParams(
        dimension_semantics=("parallel",),
        vmem_limit_bytes=min(int(est_vmem) + (16 << 20), 64 << 20),
    )

    if visited_mask is not None:
        mask2 = jnp.zeros((N_p, sz_p), jnp.int8).at[:N, :sz].set(
            visited_mask.reshape(N, sz).astype(jnp.int8))
        out = pl.pallas_call(
            _generator_kernel_masked,
            out_shape=jax.ShapeDtypeStruct((N_p, sz_p), jnp.float32),
            grid_spec=pltpu.PrefetchScalarGridSpec(
                num_scalar_prefetch=0,
                grid=grid,
                in_specs=[
                    pl.BlockSpec((row_tile, d_model), lambda i: (i, 0)),  # x rows
                    pl.BlockSpec((d_model, sz_p), lambda i: (0, 0)),      # W^T (resident)
                    pl.BlockSpec((1, sz_p), lambda i: (0, 0)),            # bias
                    pl.BlockSpec((row_tile, sz_p), lambda i: (i, 0)),     # mask rows (int8)
                ],
                out_specs=pl.BlockSpec((row_tile, sz_p), lambda i: (i, 0)),
            ),
            compiler_params=cp,
        )(x2, w_p, b_p, mask2)
    else:
        out = pl.pallas_call(
            _generator_kernel_nomask,
            out_shape=jax.ShapeDtypeStruct((N_p, sz_p), jnp.float32),
            grid_spec=pltpu.PrefetchScalarGridSpec(
                num_scalar_prefetch=0,
                grid=grid,
                in_specs=[
                    pl.BlockSpec((row_tile, d_model), lambda i: (i, 0)),  # x rows
                    pl.BlockSpec((d_model, sz_p), lambda i: (0, 0)),      # W^T (resident)
                    pl.BlockSpec((1, sz_p), lambda i: (0, 0)),            # bias
                ],
                out_specs=pl.BlockSpec((row_tile, sz_p), lambda i: (i, 0)),
            ),
            compiler_params=cp,
        )(x2, w_p, b_p)

    return out[:N, :sz].reshape(B, S, sz)


if __name__ == "__main__":
    # Small shapes consistent with Generator(d_model, sz)
    B, S, d_model, sz = 2, 8, 32, 16

    key = jax.random.PRNGKey(0)
    kx, kw, kb, km = jax.random.split(key, 4)

    # Deterministic parameter init mimicking nn.Linear (uniform +/- 1/sqrt(d_model))
    bound = 1.0 / math.sqrt(d_model)
    weight = jax.random.uniform(kw, (sz, d_model), jnp.float32, -bound, bound)
    bias = jax.random.uniform(kb, (sz,), jnp.float32, -bound, bound)
    weight_t = weight.T  # [d_model, sz]

    x = jax.random.normal(kx, (B, S, d_model), jnp.float32)
    visited_mask = jax.random.bernoulli(km, 0.25, (B, S, sz))

    logp = generator_forward(x, weight_t, bias, visited_mask)
    jax.block_until_ready(logp)

    # Reference check in plain JAX (same semantics as the PyTorch module).
    # Tolerance relaxed vs. pure-f32 because matmul inputs are bf16 (f32 accum).
    ref_logits = x @ weight.T + bias
    ref_logits_m = jnp.where(visited_mask, -1000000000.0, ref_logits)
    ref = jax.nn.log_softmax(ref_logits_m, axis=-1)
    assert jnp.allclose(logp, ref, atol=2e-2, rtol=2e-2), "mismatch vs reference (masked)"

    # Also exercise the no-mask path (no dummy mask array is DMA'd).
    logp_nomask = generator_forward(x, weight_t, bias, None)
    jax.block_until_ready(logp_nomask)
    ref_nomask = jax.nn.log_softmax(ref_logits, axis=-1)
    assert jnp.allclose(logp_nomask, ref_nomask, atol=2e-2, rtol=2e-2), \
        "mismatch vs reference (no mask)"

    print("KERNEL_OK")
</pallas_src>

<mosaic_0001>
module attributes {stable_mosaic.version = 11 : i64} {
  func.func @_generator_kernel_masked(%arg0: i32, %arg1: memref<16x32xbf16, #tpu.memory_space<vmem>>, %arg2: memref<32x128xbf16, #tpu.memory_space<vmem>>, %arg3: memref<1x128xf32, #tpu.memory_space<vmem>>, %arg4: memref<16x128xi8, #tpu.memory_space<vmem>>, %arg5: memref<16x128xf32, #tpu.memory_space<vmem>>) attributes {dimension_semantics = [#tpu.dimension_semantics<parallel>], iteration_bounds = array<i64: 1>, scalar_prefetch = 0 : i64, scratch_operands = 0 : i64, tpu.core_type = #tpu.core_type<tc>, window_params = [{transform_indices = @transform_0, window_bounds = array<i64: 16, 32>}, {pipeline_mode = #tpu.pipeline_mode<synchronous>, transform_indices = @transform_1, window_bounds = array<i64: 32, 128>}, {pipeline_mode = #tpu.pipeline_mode<synchronous>, transform_indices = @transform_2, window_bounds = array<i64: 1, 128>}, {transform_indices = @transform_3, window_bounds = array<i64: 16, 128>}, {transform_indices = @transform_4, window_bounds = array<i64: 16, 128>}]} {
    %c0 = arith.constant 0 : index
    %c0_0 = arith.constant 0 : index
    %0 = vector.load %arg1[%c0, %c0_0] : memref<16x32xbf16, #tpu.memory_space<vmem>>, vector<16x32xbf16>
    %c0_1 = arith.constant 0 : index
    %c0_2 = arith.constant 0 : index
    %1 = vector.load %arg2[%c0_1, %c0_2] : memref<32x128xbf16, #tpu.memory_space<vmem>>, vector<32x128xbf16>
    %cst = arith.constant dense<0.000000e+00> : vector<16x128xf32>
    %2 = tpu.matmul %0, %1, %cst {dimension_numbers = #tpu.dot_dimension_numbers<[1], [0], [0], [1], [0, 0, 1, 1], [], []>} : vector<16x32xbf16>, vector<32x128xbf16>, vector<16x128xf32> -> vector<16x128xf32>
    %c0_3 = arith.constant 0 : index
    %c0_4 = arith.constant 0 : index
    %3 = vector.load %arg3[%c0_3, %c0_4] : memref<1x128xf32, #tpu.memory_space<vmem>>, vector<1x128xf32>
    %4 = vector.broadcast %3 : vector<1x128xf32> to vector<16x128xf32>
    %5 = arith.addf %2, %4 : vector<16x128xf32>
    %c0_5 = arith.constant 0 : index
    %c0_6 = arith.constant 0 : index
    %6 = vector.load %arg4[%c0_5, %c0_6] : memref<16x128xi8, #tpu.memory_space<vmem>>, vector<16x128xi8>
    %c0_i8 = arith.constant 0 : i8
    %7 = vector.broadcast %c0_i8 : i8 to vector<16x128xi8>
    %8 = arith.cmpi ne, %6, %7 : vector<16x128xi8>
    %cst_7 = arith.constant -1.000000e+09 : f32
    %9 = vector.broadcast %cst_7 : f32 to vector<16x128xf32>
    %10 = arith.select %8, %9, %5 : vector<16x128xi1>, vector<16x128xf32>
    %cst_8 = arith.constant dense<0xFF800000> : vector<16xf32>
    %11 = vector.multi_reduction <maximumf>, %10, %cst_8 [1] : vector<16x128xf32> to vector<16xf32>
    %12 = vector.shape_cast %11 : vector<16xf32> to vector<16x1xf32>
    %13 = vector.broadcast %12 : vector<16x1xf32> to vector<16x128xf32>
    %14 = arith.subf %10, %13 : vector<16x128xf32>
    %15 = math.exp %14 : vector<16x128xf32>
    %cst_9 = arith.constant dense<0.000000e+00> : vector<16xf32>
    %16 = vector.multi_reduction <add>, %15, %cst_9 [1] : vector<16x128xf32> to vector<16xf32>
    %17 = vector.shape_cast %16 : vector<16xf32> to vector<16x1xf32>
    %18 = math.log %17 : vector<16x1xf32>
    %19 = vector.broadcast %18 : vector<16x1xf32> to vector<16x128xf32>
    %20 = arith.subf %14, %19 : vector<16x128xf32>
    %c0_10 = arith.constant 0 : index
    %c0_11 = arith.constant 0 : index
    %21 = vector.load %arg5[%c0_10, %c0_11] : memref<16x128xf32, #tpu.memory_space<vmem>>, vector<16x128xf32>
    tpu.vector_store %arg5[%c0_10, %c0_11], %20 {strides = array<i32>} : memref<16x128xf32, #tpu.memory_space<vmem>>, vector<16x128xf32>,
    return
  }
  func.func @transform_0(%arg0: i32) -> (i32, i32) {
    %c0_i32 = arith.constant 0 : i32
    %c0_i32_0 = arith.constant 0 : i32
    return %arg0, %c0_i32 : i32, i32
  }
  func.func @transform_1(%arg0: i32) -> (i32, i32) {
    %c0_i32 = arith.constant 0 : i32
    %c0_i32_0 = arith.constant 0 : i32
    %c0_i32_1 = arith.constant 0 : i32
    return %c0_i32, %c0_i32_0 : i32, i32
  }
  func.func @transform_2(%arg0: i32) -> (i32, i32) {
    %c0_i32 = arith.constant 0 : i32
    %c0_i32_0 = arith.constant 0 : i32
    %c0_i32_1 = arith.constant 0 : i32
    return %c0_i32, %c0_i32_0 : i32, i32
  }
  func.func @transform_3(%arg0: i32) -> (i32, i32) {
    %c0_i32 = arith.constant 0 : i32
    %c0_i32_0 = arith.constant 0 : i32
    return %arg0, %c0_i32 : i32, i32
  }
  func.func @transform_4(%arg0: i32) -> (i32, i32) {
    %c0_i32 = arith.constant 0 : i32
    %c0_i32_0 = arith.constant 0 : i32
    return %arg0, %c0_i32 : i32, i32
  }
}

</mosaic_0001>

<llo_original>
// kernel: tpu_custom_call.1
$region0: #{tpu_custom_call.1}
  #allocation0 [shape = 'u32[]', space=smem, size = 0x4, offset = 0x4, fixed_abs, tag = 'smem constant byte address 0x4 - core index']
  #allocation1 [shape = 'u32[144,128]{1,0:T(1,128)}', space=vmem, size = 0x12000, scoped, tag = 'internal scratch']
  %s0 = inlined_call_operand.hbm [shape: bf16[16,32], index: 0, kind: input, shape index: {}]
  %s1 = inlined_call_operand.hbm [shape: bf16[32,128], index: 1, kind: input, shape index: {}]
  %s2 = inlined_call_operand.vmem [shape: f32[1,128], index: 2, kind: input, shape index: {}]
  %s3 = inlined_call_operand.vmem [shape: s8[16,128], index: 3, kind: input, shape index: {}]
  %s4 = inlined_call_operand.hbm [shape: f32[16,128], index: 4, kind: output, shape index: {}]
  %s5 = sld [smem:[#allocation0]]
  $region34: #{tpu_custom_call.1} parent=0
    _
  %s7 = ssub.s32 1, %s5
  %s8 = scalar_select 0, %s7, %s5
  $region1: #{tpu_custom_call.1} parent=0
    #allocation2 [shape = 'u8[4096]{0}', space=vmem, size = 0x1000, scoped, tag = 'input window, operand 0, single buffered']
    #allocation3 [shape = 's32[1]{0}', space=sflag, size = 0x4, scoped, tag = 'scoped memory for tpu_custom_call.1']
    #allocation4 [shape = 's32[1]{0}', space=sflag, size = 0x4, scoped, tag = 'scoped memory for tpu_custom_call.1']
    #allocation5 [shape = 'u8[8192]{0}', space=vmem, size = 0x2000, scoped, tag = 'input window, operand 1, single buffered']
    #allocation6 [shape = 's32[1]{0}', space=sflag, size = 0x4, scoped, tag = 'scoped memory for tpu_custom_call.1']
    #allocation7 [shape = 'u8[8192]{0}', space=vmem, size = 0x2000, scoped, tag = 'output window, operand 0, single buffered']
    %9 = vsyncpa [#allocation3], 0
    %10 = vsyncpa [#allocation6], 0
    %11 = vsyncpa [#allocation4], 0
    // Predicated region
    $region2: #{tpu_custom_call.1} parent=1 // pred_check
      _
    $region3: #{tpu_custom_call.1} parent=1 // pred_check_branch
      %13 = sbr.rel (0) target = $region5
    $region4: #{tpu_custom_call.1} parent=1 // pred_region
      %s15 = ssub.s32 128, 128
      %16 = vsyncadd [#allocation3], %s15
      %s17 = sshll.u32 [#allocation2], 4
      %s18 = int_to_ptr.vmem [resolvable:$true] %s17
      %23 = dma.hbm_to_vmem [thread:$0]  %s0, 128, %s18, [#allocation3], 64, 64, 4
    $region5: #{tpu_custom_call.1} parent=1 // pred_fallthru
      _
    // Predicated region
    $region6: #{tpu_custom_call.1} parent=1 // pred_check
      _
    $region7: #{tpu_custom_call.1} parent=1 // pred_check_branch
      %25 = sbr.rel (0) target = $region9
    $region8: #{tpu_custom_call.1} parent=1 // pred_region
      %s27 = ssub.s32 256, 256
      %28 = vsyncadd [#allocation6], %s27
      %s29 = sshll.u32 [#allocation5], 4
      %s30 = int_to_ptr.vmem [resolvable:$true] %s29
      %35 = dma.hbm_to_vmem [thread:$0]  %s1, 256, %s30, [#allocation6], 64, 64, 4
    $region9: #{tpu_custom_call.1} parent=1 // pred_fallthru
      _
    // Predicated region
    $region10: #{tpu_custom_call.1} parent=1 // pred_check
      _
    $region11: #{tpu_custom_call.1} parent=1 // pred_check_branch
      %37 = sbr.rel (0) target = $region13
    $region12: #{tpu_custom_call.1} parent=1 // pred_region
      _
    $region13: #{tpu_custom_call.1} parent=1 // pred_fallthru
      _
    // Predicated region
    $region14: #{tpu_custom_call.1} parent=1 // pred_check
      _
    $region15: #{tpu_custom_call.1} parent=1 // pred_check_branch
      %39 = sbr.rel (0) target = $region17
    $region16: #{tpu_custom_call.1} parent=1 // pred_region
      _
    $region17: #{tpu_custom_call.1} parent=1 // pred_fallthru
      _
    // Predicated region
    $region18: #{tpu_custom_call.1} parent=1 // pred_check
      _
    $region19: #{tpu_custom_call.1} parent=1 // pred_check_branch
      %41 = sbr.rel (0) target = $region21
    $region20: #{tpu_custom_call.1} parent=1 // pred_region
      %42 = dma.done [#allocation3], 128
    $region21: #{tpu_custom_call.1} parent=1 // pred_fallthru
      _
    // Predicated region
    $region22: #{tpu_custom_call.1} parent=1 // pred_check
      _
    $region23: #{tpu_custom_call.1} parent=1 // pred_check_branch
      %44 = sbr.rel (0) target = $region25
    $region24: #{tpu_custom_call.1} parent=1 // pred_region
      %45 = dma.done [#allocation6], 256
    $region25: #{tpu_custom_call.1} parent=1 // pred_fallthru
      _
    %v49 = vld [vmem:[#allocation2] sm:$0xf]
    %v50 = vld [vmem:[#allocation2 + $0x4] sm:$0xf]
    %v51 = vld [vmem:[#allocation5] sm:$0xf]
    %v52 = vld [vmem:[#allocation5 + $0x4] sm:$0xf]
    %v53 = vld [vmem:[#allocation5 + $0x8] sm:$0xf]
    %v54 = vld [vmem:[#allocation5 + $0xc] sm:$0xf]
    %v55 = vld [vmem:[%s2] sm:$0x1]
    %v57 = vlaneseq
    %v58 = vshrl.u32 %v57, 7
    %v59 = vsub.s32 0, %v58
    %v60 = vrot.slane %v55, %v59
    %v64 = vunpack.c.l.b16 %v49
    %v65 = vunpack.c.l.b16 %v50
    %v66 = vpack.c.b16 %v65, %v64
    %v71 = vunpack.c.l.b16 %v51
    %v72 = vunpack.c.l.b16 %v52
    %v73 = vunpack.c.l.b16 %v53
    %v74 = vunpack.c.l.b16 %v54
    %v75 = vpack.c.b16 %v72, %v71
    %v76 = vpack.c.b16 %v74, %v73
    %vm79 = vcmask 261120
    %v81 = vsel %vm79, %v66, 0
    %83 = vmatprep.subr.bf16.mxu0 0
    %84 = vmatpush1.bf16.msra.mxu0 %v75
    %85 = vmatprep.subr.bf16.mxu0 0
    %86 = vmatpush1.bf16.msra.mxu0 %v76
    %87 = vmatprep.subr.bf16.mxu0 0
    %88 = vmatpush1.bf16.msra.mxu0 0
    %89 = vmatprep.subr.bf16.mxu0 0
    %90 = vmatpush1.bf16.msra.mxu0 0
    %91 = vmatprep.subr.bf16.mxu0 0
    %92 = vmatpush1.bf16.msra.mxu0 0
    %93 = vmatprep.subr.bf16.mxu0 0
    %94 = vmatpush1.bf16.msra.mxu0 0
    %95 = vmatprep.subr.bf16.mxu0 0
    %96 = vmatpush1.bf16.msra.mxu0 0
    %97 = vmatprep.subr.bf16.mxu0 0
    %98 = vmatpush1.bf16.msra.mxu0 0
    %99 = vmatprep.subr.bf16.mxu0 0
    %100 = vmatpush1.bf16.msra.mxu0 0
    %101 = vmatprep.subr.bf16.mxu0 0
    %102 = vmatpush1.bf16.msra.mxu0 0
    %103 = vmatprep.subr.bf16.mxu0 0
    %104 = vmatpush1.bf16.msra.mxu0 0
    %105 = vmatprep.subr.bf16.mxu0 0
    %106 = vmatpush1.bf16.msra.mxu0 0
    %107 = vmatprep.subr.bf16.mxu0 0
    %108 = vmatpush1.bf16.msra.mxu0 0
    %109 = vmatprep.subr.bf16.mxu0 0
    %110 = vmatpush1.bf16.msra.mxu0 0
    %111 = vmatprep.subr.bf16.mxu0 0
    %112 = vmatpush1.bf16.msra.mxu0 0
    %113 = vmatprep.subr.bf16.mxu0 0
    %114 = vmatpush1.bf16.msra.mxu0 0
    %115 = vmatprep.mubr.bf16.mxu0 0
    %116 = vmatmul.mubr.bf16.gmra.mrb[0].mxu0 %v81
    %v117 = vpop.f32.mrb[0].mxu0
    %v118 = vadd.f32 %v60, %v117
    %v119 = vpop.f32.mrb[0].mxu0
    %v120 = vpop.f32.mrb[0].mxu0
    %v121 = vadd.f32 %v60, %v120
    %v122 = vpop.f32.mrb[0].mxu0
    %123 = vdwg.mxu0
    %v124 = vld [vmem:[%s3] sm:$0x3]
    %v125 = vld [vmem:[%s3 + $0x2] sm:$0x3]
    %vm126 = vnez %v124
    %vm127 = vnez %v125
    %v128 = vsel %vm126, 16843009, 0
    %v129 = vsel %vm127, 16843009, 0
    %v130 = vunpack.c.0.s8 %v128
    %v131 = vunpack.c.0.s8 %v129
    %vm132 = vcmp.ne.s32.totalorder %v130, 0
    %vm133 = vcmp.ne.s32.totalorder %v131, 0
    %v134 = vsel %vm132, -1e+09, %v118
    %v135 = vsel %vm133, -1e+09, %v121
    %136 = vmax.xlane.f32.xlu0 %v134
    %v137 = vpop.xlane.xlu0 %136
    %138 = vmax.xlane.f32.xlu0 %v135
    %v139 = vpop.xlane.xlu0 %138
    %v140 = vsub.f32 %v134, %v137
    %v141 = vsub.f32 %v135, %v139
    %v142 = vmul.f32 %v140, 1.442695
    %v143 = vpow.pop %v142
    %v144 = vmul.f32 %v141, 1.442695
    %v145 = vpow.pop %v144
    %146 = vadd.xlane.f32.xlu0 %v143
    %v147 = vpop.xlane.xlu0 %146
    %148 = vadd.xlane.f32.xlu0 %v145
    %v149 = vpop.xlane.xlu0 %148
    %v150 = vlog2.pop %v147
    %v151 = vmul.f32 %v150, 0.6931472
    %v152 = vlog2.pop %v149
    %v153 = vmul.f32 %v152, 0.6931472
    %v154 = vsub.f32 %v140, %v151
    %v155 = vsub.f32 %v141, %v153
    %156 = vst [vmem:[#allocation7] sm:$0xff] %v154
    %157 = vst [vmem:[#allocation7 + $0x8] sm:$0xff] %v155
    // Predicated region
    $region26: #{tpu_custom_call.1} parent=1 // pred_check
      _
    $region27: #{tpu_custom_call.1} parent=1 // pred_check_branch
      %159 = sbr.rel (0) target = $region29
    $region28: #{tpu_custom_call.1} parent=1 // pred_region
      %s161 = ssub.s32 256, 256
      %162 = vsyncadd [#allocation4], %s161
      %s163 = sshll.u32 [#allocation7], 4
      %s164 = int_to_ptr.vmem [resolvable:$true] %s163
      %169 = dma.vmem_to_hbm [thread:$0]  %s164, 256, %s4, [#allocation4], 128, 128, 8
    $region29: #{tpu_custom_call.1} parent=1 // pred_fallthru
      _
    // Predicated region
    $region30: #{tpu_custom_call.1} parent=1 // pred_check
      _
    $region31: #{tpu_custom_call.1} parent=1 // pred_check_branch
      %171 = sbr.rel (0) target = $region33
    $region32: #{tpu_custom_call.1} parent=1 // pred_region
      %172 = dma.done [#allocation4], 256
    $region33: #{tpu_custom_call.1} parent=1 // pred_fallthru
      _
    %173 = vsyncpa [#allocation3], 1
    %174 = vsyncpa [#allocation6], 1
    %175 = vsyncpa [#allocation4], 1

</llo_original>
